<compile_context>
chip_gen: v5e
topology: v5e:2x2
jax: 0.10.0
libtpu: 0.0.40
codegen_flags: <defaults>
</compile_context>

<pallas_src>
import jax
import jax.numpy as jnp
from jax.experimental import pallas as pl
from jax.experimental.pallas import tpu as pltpu

BN_EPS = 1e-5
LEAKY_SLOPE = 0.2
LANE = 128


def _round_up(x, m):
    return ((x + m - 1) // m) * m


def _largest_divisor(total, cap):
    cap = max(1, min(total, cap))
    for d in range(cap, 0, -1):
        if total % d == 0:
            return d
    return 1


def _vmem_limit_bytes():
    # ~3/4 of physical VMEM: ~96 MiB on v5e/v6e (128 MiB), ~48 MiB on v7x (64 MiB).
    try:
        cap = pltpu.get_tpu_info().vmem_capacity_bytes
    except Exception:
        cap = 64 << 20
    return max(32 << 20, min(int(cap * 3 // 4), 100 << 20))


# ---------------------------------------------------------------------------
# Pass 1: fused-im2col conv (4 shifted MXU dots per output row) + BN partials
# ---------------------------------------------------------------------------
def _make_conv_stats_kernel(wo):
    inv_cnt = 1.0 / float(wo)

    def kernel(xa_ref, xb_ref, w_ref, y_ref, st_ref):
        # xa_ref/xb_ref: (Wo+1, 4*Cin) bf16  space-to-depth rows oh and oh+1
        # w_ref:         (4, 4*Cin, Cp) bf16 reordered SN weight (VMEM resident)
        # y_ref:         (Wo, Cp) bf16       conv output row oh
        # st_ref:        (8, 2*Cp) f32       [ sum_y | centred ssq ], row-duplicated
        acc = jnp.dot(xa_ref[0:wo, :], w_ref[0], preferred_element_type=jnp.float32)
        acc = acc + jnp.dot(xa_ref[1:wo + 1, :], w_ref[1],
                            preferred_element_type=jnp.float32)
        acc = acc + jnp.dot(xb_ref[0:wo, :], w_ref[2],
                            preferred_element_type=jnp.float32)
        acc = acc + jnp.dot(xb_ref[1:wo + 1, :], w_ref[3],
                            preferred_element_type=jnp.float32)
        # bf16 intermediate; stats are taken from the exact f32 accumulator.
        y_ref[...] = acc.astype(y_ref.dtype)
        s = jnp.sum(acc, axis=0, keepdims=True)            # (1, Cp)
        mu = s * inv_cnt
        d = acc - mu
        m2 = jnp.sum(d * d, axis=0, keepdims=True)          # (1, Cp) centred
        cp = s.shape[1]
        st_ref[:, :cp] = jnp.broadcast_to(s, (8, cp))
        st_ref[:, cp:] = jnp.broadcast_to(m2, (8, cp))

    return kernel


def _conv_stats(xs, w2, ho, wo):
    n, hop, wop, c4 = xs.shape
    cp = w2.shape[-1]
    ce = pl.CostEstimate(
        flops=2 * n * ho * wo * (4 * c4) * cp,
        transcendentals=0,
        bytes_accessed=(2 * xs.size * 2 + w2.size * 2
                        + n * ho * wo * cp * 2 + n * ho * 8 * 2 * cp * 4),
    )
    return pl.pallas_call(
        _make_conv_stats_kernel(wo),
        out_shape=(
            jax.ShapeDtypeStruct((n * ho, wo, cp), jnp.bfloat16),     # conv rows
            jax.ShapeDtypeStruct((n * ho, 8, 2 * cp), jnp.float32),   # BN partials
        ),
        grid=(n, ho),
        in_specs=[
            # two single-row views of the same s2d tensor (rows oh and oh+1)
            pl.BlockSpec((None, None, wop, c4), lambda b, i: (b, i, 0, 0)),
            pl.BlockSpec((None, None, wop, c4), lambda b, i: (b, i + 1, 0, 0)),
            # weight: whole-array VMEM resident -> single copy, no double buffer
            pl.BlockSpec(memory_space=pltpu.MemorySpace.VMEM),
        ],
        out_specs=(
            pl.BlockSpec((None, wo, cp), lambda b, i: (b * ho + i, 0, 0)),
            pl.BlockSpec((None, 8, 2 * cp), lambda b, i: (b * ho + i, 0, 0)),
        ),
        compiler_params=pltpu.CompilerParams(
            dimension_semantics=("parallel", "parallel"),
            vmem_limit_bytes=_vmem_limit_bytes(),
        ),
        cost_estimate=ce,
    )(xs, xs, w2)


# ---------------------------------------------------------------------------
# Pass 2: folded BatchNorm affine (scale/shift) + LeakyReLU(0.2), streaming
# ---------------------------------------------------------------------------
def _bn_lrelu_kernel(y_ref, scale_ref, shift_ref, o_ref):
    z = y_ref[...].astype(jnp.float32) * scale_ref[...] + shift_ref[...]
    z = jnp.where(z > 0.0, z, LEAKY_SLOPE * z)
    # :Cout un-padding folded into the out_spec (no XLA slice afterwards)
    o_ref[...] = z[..., : o_ref.shape[-1]].astype(o_ref.dtype)


def _bn_lrelu(y, scale, shift, cout):
    rows, wo, cp = y.shape
    tb = _largest_divisor(rows, max(1, 2048 // max(wo, 1)))   # ~2048 rows / step
    nt = rows // tb
    alias = {0: 0} if cout == cp else {}                      # in place when lane-dense
    ce = pl.CostEstimate(
        flops=4 * rows * wo * cp,
        transcendentals=0,
        bytes_accessed=rows * wo * cp * 2 + rows * wo * cout * 2,
    )
    return pl.pallas_call(
        _bn_lrelu_kernel,
        out_shape=jax.ShapeDtypeStruct((rows, wo, cout), jnp.bfloat16),
        grid=(nt,),
        in_specs=[
            pl.BlockSpec((tb, wo, cp), lambda i: (i, 0, 0)),
            pl.BlockSpec(memory_space=pltpu.MemorySpace.VMEM),
            pl.BlockSpec(memory_space=pltpu.MemorySpace.VMEM),
        ],
        out_specs=pl.BlockSpec((tb, wo, cout), lambda i: (i, 0, 0)),
        compiler_params=pltpu.CompilerParams(
            dimension_semantics=("parallel",),
            vmem_limit_bytes=_vmem_limit_bytes(),
        ),
        cost_estimate=ce,
        input_output_aliases=alias,
    )(y, scale, shift)


# ---------------------------------------------------------------------------
# Glue: spectral norm (parameter prep), space-to-depth, BN stat combine
# ---------------------------------------------------------------------------
def spectral_normalize(w, u, n_power_iterations=1, eps=1e-12):
    """Mimics torch.nn.utils.spectral_norm on a Conv2d weight (one power iter)."""
    cout = w.shape[0]
    w_mat = w.reshape(cout, -1)
    u = u / (jnp.linalg.norm(u) + eps)
    v = None
    for _ in range(n_power_iterations):
        v = w_mat.T @ u
        v = v / (jnp.linalg.norm(v) + eps)
        u = w_mat @ v
        u = u / (jnp.linalg.norm(u) + eps)
    sigma = u @ (w_mat @ v)
    return w / sigma


class DownBlockPallas:
    """separable=False DownBlock: SN-Conv2d(4,2,1) -> BatchNorm2d(train) -> LeakyReLU(0.2).

    Takes NCHW input (like the PyTorch module); returns NHWC bf16 by default
    (pass out_layout="NCHW" to add the transpose back).
    """

    def __init__(self, in_planes, out_planes, key):
        k_w, k_b, k_u = jax.random.split(key, 3)
        fan_in = in_planes * 4 * 4
        bound = 1.0 / jnp.sqrt(fan_in)
        self.weight = jax.random.uniform(
            k_w, (out_planes, in_planes, 4, 4), jnp.float32, -bound, bound)
        # Conv bias exists in the module but is cancelled exactly by the
        # training-mode BatchNorm mean subtraction -> never enters the kernels.
        self.bias = jax.random.uniform(
            k_b, (out_planes,), jnp.float32, -bound, bound)
        self.sn_u = jax.random.normal(k_u, (out_planes,), jnp.float32)
        self.gamma = jnp.ones((out_planes,), jnp.float32)   # BN affine init
        self.beta = jnp.zeros((out_planes,), jnp.float32)
        self.in_planes = in_planes
        self.out_planes = out_planes

    def __call__(self, x_nchw, out_layout="NHWC"):
        n, cin, h, w = x_nchw.shape
        assert cin == self.in_planes
        assert h % 2 == 0 and w % 2 == 0, "even spatial dims expected (4/2/1 conv)"
        cout = self.out_planes
        # NOTE(perf): keep 128-lane granularity; 256 would better fill v6e/v7x MXU
        # columns but the kernel pair is HBM-bound, so padding bytes dominate.
        cp = _round_up(cout, LANE)
        ho, wo = h // 2, w // 2

        # --- parameter prep (tiny, plain JAX) ----------------------------------
        w_sn = spectral_normalize(self.weight, self.sn_u)       # (Cout,Cin,4,4) f32
        w_ = jnp.transpose(w_sn, (2, 3, 1, 0))                  # (kh,kw,Cin,Cout)
        w_ = w_.reshape(2, 2, 2, 2, cin, cout)                  # (a,r,b,s,Cin,Cout)
        w_ = jnp.transpose(w_, (0, 2, 1, 3, 4, 5))              # (a,b,r,s,Cin,Cout)
        w2 = w_.reshape(4, 4 * cin, cout)                       # (ab, 4Cin, Cout)
        w2 = jnp.pad(w2, ((0, 0), (0, 0), (0, cp - cout))).astype(jnp.bfloat16)

        # --- input prep: NHWC pad + space-to-depth (~1x input bytes; replaces the
        #     old 4x-inflated im2col patch matrix in HBM) --------------------------
        xs = jnp.transpose(x_nchw, (0, 2, 3, 1))                # NHWC
        xs = jnp.pad(xs, ((0, 0), (1, 1), (1, 1), (0, 0)))      # pad = 1
        xs = xs.reshape(n, ho + 1, 2, wo + 1, 2, cin)
        xs = jnp.transpose(xs, (0, 1, 3, 2, 4, 5)).reshape(n, ho + 1, wo + 1, 4 * cin)
        xs = xs.astype(jnp.bfloat16)

        # --- Pass 1: fused-im2col conv + per-row BN partial statistics ---------
        y, stats = _conv_stats(xs, w2, ho, wo)                  # y: (N*Ho, Wo, Cp) bf16

        # --- finalize BN batch stats (Chan parallel combine, f32) + fold affine -
        st = stats[:, 0, :]                                     # (N*Ho, 2Cp)
        s_i, m2_i = st[:, :cp], st[:, cp:]
        cnt_i = jnp.float32(wo)
        total = jnp.float32(n * ho * wo)
        mean = jnp.sum(s_i, axis=0) / total                     # (Cp,)
        mean_i = s_i / cnt_i
        m2 = jnp.sum(m2_i, axis=0) + cnt_i * jnp.sum((mean_i - mean) ** 2, axis=0)
        var = m2 / total                                        # biased, like BN training
        inv = jax.lax.rsqrt(var + BN_EPS)
        gamma_p = jnp.pad(self.gamma, (0, cp - cout))
        beta_p = jnp.pad(self.beta, (0, cp - cout))
        scale = (gamma_p * inv).reshape(1, 1, cp)
        shift = (beta_p - mean * gamma_p * inv).reshape(1, 1, cp)

        # --- Pass 2: folded BN affine + LeakyReLU (in place when Cp == Cout) ----
        out = _bn_lrelu(y, scale, shift, cout)                  # (N*Ho, Wo, Cout) bf16
        out = out.reshape(n, ho, wo, cout)                      # NHWC, no copy
        if out_layout == "NCHW":
            out = jnp.transpose(out, (0, 3, 1, 2))
        return out


# ---------------------------------------------------------------------------
def _reference_downblock(x_nchw, block):
    """Pure-JAX f32 reference: SN-conv(4,2,1)+bias -> train BN -> LeakyReLU (NHWC)."""
    w_sn = spectral_normalize(block.weight, block.sn_u)
    y = jax.lax.conv_general_dilated(
        x_nchw.astype(jnp.float32), w_sn, (2, 2), ((1, 1), (1, 1)),
        dimension_numbers=("NCHW", "OIHW", "NCHW"))
    y = y + block.bias.reshape(1, -1, 1, 1)
    mean = jnp.mean(y, axis=(0, 2, 3), keepdims=True)
    var = jnp.mean((y - mean) ** 2, axis=(0, 2, 3), keepdims=True)
    z = (y - mean) * jax.lax.rsqrt(var + BN_EPS)
    z = z * block.gamma.reshape(1, -1, 1, 1) + block.beta.reshape(1, -1, 1, 1)
    z = jnp.where(z > 0, z, LEAKY_SLOPE * z)
    return jnp.transpose(z, (0, 2, 3, 1))


if __name__ == "__main__":
    key = jax.random.PRNGKey(0)
    k_p1, k_x1, k_p2, k_x2 = jax.random.split(key, 4)

    # Case 1: Cout < 128 (padded-lane path; Pass 2 writes un-padded channels).
    N, C_IN, H, W, C_OUT = 2, 4, 16, 16, 8
    block = DownBlockPallas(C_IN, C_OUT, k_p1)
    x = jax.random.normal(k_x1, (N, C_IN, H, W), jnp.float32)
    y = jax.jit(block.__call__)(x)
    jax.block_until_ready(y)
    assert y.shape == (N, H // 2, W // 2, C_OUT), y.shape
    ref = _reference_downblock(x, block)
    err = float(jnp.max(jnp.abs(y.astype(jnp.float32) - ref)))
    assert err < 0.1, f"case1 max abs err {err}"   # bf16 intermediates -> loose tol

    # Case 2: Cout == 128 (lane-dense -> in-place aliased Pass 2).
    N2, C_IN2, H2, W2, C_OUT2 = 1, 8, 16, 16, 128
    block2 = DownBlockPallas(C_IN2, C_OUT2, k_p2)
    x2 = jax.random.normal(k_x2, (N2, C_IN2, H2, W2), jnp.float32)
    y2 = jax.jit(block2.__call__)(x2)
    jax.block_until_ready(y2)
    assert y2.shape == (N2, H2 // 2, W2 // 2, C_OUT2), y2.shape
    ref2 = _reference_downblock(x2, block2)
    err2 = float(jnp.max(jnp.abs(y2.astype(jnp.float32) - ref2)))
    assert err2 < 0.1, f"case2 max abs err {err2}"

    print("KERNEL_OK")
</pallas_src>

<mosaic_0001>
module attributes {stable_mosaic.version = 11 : i64} {
  func.func @kernel(%arg0: i32, %arg1: i32, %arg2: memref<1x1x9x16xbf16, #tpu.memory_space<vmem>>, %arg3: memref<1x1x9x16xbf16, #tpu.memory_space<vmem>>, %arg4: memref<4x16x128xbf16, #tpu.memory_space<vmem>>, %arg5: memref<1x8x128xbf16, #tpu.memory_space<vmem>>, %arg6: memref<1x8x256xf32, #tpu.memory_space<vmem>>) attributes {dimension_semantics = [#tpu.dimension_semantics<parallel>, #tpu.dimension_semantics<parallel>], iteration_bounds = array<i64: 2, 8>, scalar_prefetch = 0 : i64, scratch_operands = 0 : i64, tpu.core_type = #tpu.core_type<tc>, window_params = [{transform_indices = @transform_0, window_bounds = array<i64: 1, 1, 9, 16>}, {transform_indices = @transform_1, window_bounds = array<i64: 1, 1, 9, 16>}, {pipeline_mode = #tpu.pipeline_mode<synchronous>, transform_indices = @transform_2, window_bounds = array<i64: 4, 16, 128>}, {transform_indices = @transform_3, window_bounds = array<i64: 1, 8, 128>}, {transform_indices = @transform_4, window_bounds = array<i64: 1, 8, 256>}]} {
    %c0 = arith.constant 0 : index
    %c0_0 = arith.constant 0 : index
    %c0_1 = arith.constant 0 : index
    %c0_2 = arith.constant 0 : index
    %0 = vector.load %arg2[%c0, %c0_0, %c0_1, %c0_2] : memref<1x1x9x16xbf16, #tpu.memory_space<vmem>>, vector<1x1x8x16xbf16>
    %1 = vector.shape_cast %0 : vector<1x1x8x16xbf16> to vector<8x16xbf16>
    %c0_3 = arith.constant 0 : index
    %c0_4 = arith.constant 0 : index
    %c0_5 = arith.constant 0 : index
    %2 = vector.load %arg4[%c0_3, %c0_4, %c0_5] : memref<4x16x128xbf16, #tpu.memory_space<vmem>>, vector<1x16x128xbf16>
    %3 = vector.shape_cast %2 : vector<1x16x128xbf16> to vector<16x128xbf16>
    %cst = arith.constant dense<0.000000e+00> : vector<8x128xf32>
    %4 = tpu.matmul %1, %3, %cst {dimension_numbers = #tpu.dot_dimension_numbers<[1], [0], [0], [1], [0, 0, 1, 1], [], []>} : vector<8x16xbf16>, vector<16x128xbf16>, vector<8x128xf32> -> vector<8x128xf32>
    %c0_6 = arith.constant 0 : index
    %c0_7 = arith.constant 0 : index
    %c1 = arith.constant 1 : index
    %c0_8 = arith.constant 0 : index
    %5 = vector.load %arg2[%c0_6, %c0_7, %c1, %c0_8] : memref<1x1x9x16xbf16, #tpu.memory_space<vmem>>, vector<1x1x8x16xbf16>
    %6 = vector.shape_cast %5 : vector<1x1x8x16xbf16> to vector<8x16xbf16>
    %c1_9 = arith.constant 1 : index
    %c0_10 = arith.constant 0 : index
    %c0_11 = arith.constant 0 : index
    %7 = vector.load %arg4[%c1_9, %c0_10, %c0_11] : memref<4x16x128xbf16, #tpu.memory_space<vmem>>, vector<1x16x128xbf16>
    %8 = vector.shape_cast %7 : vector<1x16x128xbf16> to vector<16x128xbf16>
    %cst_12 = arith.constant dense<0.000000e+00> : vector<8x128xf32>
    %9 = tpu.matmul %6, %8, %cst_12 {dimension_numbers = #tpu.dot_dimension_numbers<[1], [0], [0], [1], [0, 0, 1, 1], [], []>} : vector<8x16xbf16>, vector<16x128xbf16>, vector<8x128xf32> -> vector<8x128xf32>
    %10 = arith.addf %4, %9 : vector<8x128xf32>
    %c0_13 = arith.constant 0 : index
    %c0_14 = arith.constant 0 : index
    %c0_15 = arith.constant 0 : index
    %c0_16 = arith.constant 0 : index
    %11 = vector.load %arg3[%c0_13, %c0_14, %c0_15, %c0_16] : memref<1x1x9x16xbf16, #tpu.memory_space<vmem>>, vector<1x1x8x16xbf16>
    %12 = vector.shape_cast %11 : vector<1x1x8x16xbf16> to vector<8x16xbf16>
    %c2 = arith.constant 2 : index
    %c0_17 = arith.constant 0 : index
    %c0_18 = arith.constant 0 : index
    %13 = vector.load %arg4[%c2, %c0_17, %c0_18] : memref<4x16x128xbf16, #tpu.memory_space<vmem>>, vector<1x16x128xbf16>
    %14 = vector.shape_cast %13 : vector<1x16x128xbf16> to vector<16x128xbf16>
    %cst_19 = arith.constant dense<0.000000e+00> : vector<8x128xf32>
    %15 = tpu.matmul %12, %14, %cst_19 {dimension_numbers = #tpu.dot_dimension_numbers<[1], [0], [0], [1], [0, 0, 1, 1], [], []>} : vector<8x16xbf16>, vector<16x128xbf16>, vector<8x128xf32> -> vector<8x128xf32>
    %16 = arith.addf %10, %15 : vector<8x128xf32>
    %c0_20 = arith.constant 0 : index
    %c0_21 = arith.constant 0 : index
    %c1_22 = arith.constant 1 : index
    %c0_23 = arith.constant 0 : index
    %17 = vector.load %arg3[%c0_20, %c0_21, %c1_22, %c0_23] : memref<1x1x9x16xbf16, #tpu.memory_space<vmem>>, vector<1x1x8x16xbf16>
    %18 = vector.shape_cast %17 : vector<1x1x8x16xbf16> to vector<8x16xbf16>
    %c3 = arith.constant 3 : index
    %c0_24 = arith.constant 0 : index
    %c0_25 = arith.constant 0 : index
    %19 = vector.load %arg4[%c3, %c0_24, %c0_25] : memref<4x16x128xbf16, #tpu.memory_space<vmem>>, vector<1x16x128xbf16>
    %20 = vector.shape_cast %19 : vector<1x16x128xbf16> to vector<16x128xbf16>
    %cst_26 = arith.constant dense<0.000000e+00> : vector<8x128xf32>
    %21 = tpu.matmul %18, %20, %cst_26 {dimension_numbers = #tpu.dot_dimension_numbers<[1], [0], [0], [1], [0, 0, 1, 1], [], []>} : vector<8x16xbf16>, vector<16x128xbf16>, vector<8x128xf32> -> vector<8x128xf32>
    %22 = arith.addf %16, %21 : vector<8x128xf32>
    %23 = arith.truncf %22 : vector<8x128xf32> to vector<8x128xbf16>
    %c0_27 = arith.constant 0 : index
    %c0_28 = arith.constant 0 : index
    %c0_29 = arith.constant 0 : index
    %24 = vector.load %arg5[%c0_27, %c0_28, %c0_29] : memref<1x8x128xbf16, #tpu.memory_space<vmem>>, vector<1x8x128xbf16>
    %25 = vector.shape_cast %24 : vector<1x8x128xbf16> to vector<8x128xbf16>
    %26 = vector.shape_cast %23 : vector<8x128xbf16> to vector<1x8x128xbf16>
    tpu.vector_store %arg5[%c0_27, %c0_28, %c0_29], %26 {strides = array<i32>} : memref<1x8x128xbf16, #tpu.memory_space<vmem>>, vector<1x8x128xbf16>,
    %cst_30 = arith.constant dense<0.000000e+00> : vector<128xf32>
    %27 = vector.multi_reduction <add>, %22, %cst_30 [0] : vector<8x128xf32> to vector<128xf32>
    %28 = vector.shape_cast %27 : vector<128xf32> to vector<1x128xf32>
    %cst_31 = arith.constant 1.250000e-01 : f32
    %29 = vector.broadcast %cst_31 : f32 to vector<1x128xf32>
    %30 = arith.mulf %28, %29 : vector<1x128xf32>
    %31 = vector.broadcast %30 : vector<1x128xf32> to vector<8x128xf32>
    %32 = arith.subf %22, %31 : vector<8x128xf32>
    %33 = arith.mulf %32, %32 : vector<8x128xf32>
    %cst_32 = arith.constant dense<0.000000e+00> : vector<128xf32>
    %34 = vector.multi_reduction <add>, %33, %cst_32 [0] : vector<8x128xf32> to vector<128xf32>
    %35 = vector.shape_cast %34 : vector<128xf32> to vector<1x128xf32>
    %36 = vector.shape_cast %28 : vector<1x128xf32> to vector<1x128xf32>
    %37 = vector.broadcast %36 : vector<1x128xf32> to vector<8x128xf32>
    %c0_33 = arith.constant 0 : index
    %c0_34 = arith.constant 0 : index
    %c0_35 = arith.constant 0 : index
    %38 = vector.load %arg6[%c0_33, %c0_34, %c0_35] : memref<1x8x256xf32, #tpu.memory_space<vmem>>, vector<1x8x128xf32>
    %39 = vector.shape_cast %38 : vector<1x8x128xf32> to vector<8x128xf32>
    %40 = vector.shape_cast %37 : vector<8x128xf32> to vector<1x8x128xf32>
    tpu.vector_store %arg6[%c0_33, %c0_34, %c0_35], %40 {strides = array<i32>} : memref<1x8x256xf32, #tpu.memory_space<vmem>>, vector<1x8x128xf32>,
    %41 = vector.shape_cast %35 : vector<1x128xf32> to vector<1x128xf32>
    %42 = vector.broadcast %41 : vector<1x128xf32> to vector<8x128xf32>
    %c0_36 = arith.constant 0 : index
    %c0_37 = arith.constant 0 : index
    %c128 = arith.constant 128 : index
    %43 = vector.load %arg6[%c0_36, %c0_37, %c128] : memref<1x8x256xf32, #tpu.memory_space<vmem>>, vector<1x8x128xf32>
    %44 = vector.shape_cast %43 : vector<1x8x128xf32> to vector<8x128xf32>
    %45 = vector.shape_cast %42 : vector<8x128xf32> to vector<1x8x128xf32>
    tpu.vector_store %arg6[%c0_36, %c0_37, %c128], %45 {strides = array<i32>} : memref<1x8x256xf32, #tpu.memory_space<vmem>>, vector<1x8x128xf32>,
    return
  }
  func.func @transform_0(%arg0: i32, %arg1: i32) -> (i32, i32, i32, i32) {
    %c0_i32 = arith.constant 0 : i32
    %c0_i32_0 = arith.constant 0 : i32
    %c0_i32_1 = arith.constant 0 : i32
    return %arg0, %arg1, %c0_i32, %c0_i32_0 : i32, i32, i32, i32
  }
  func.func @transform_1(%arg0: i32, %arg1: i32) -> (i32, i32, i32, i32) {
    %c1_i32 = arith.constant 1 : i32
    %0 = arith.addi %arg1, %c1_i32 : i32
    %c0_i32 = arith.constant 0 : i32
    %c0_i32_0 = arith.constant 0 : i32
    %c0_i32_1 = arith.constant 0 : i32
    return %arg0, %0, %c0_i32, %c0_i32_0 : i32, i32, i32, i32
  }
  func.func @transform_2(%arg0: i32, %arg1: i32) -> (i32, i32, i32) {
    %c0_i32 = arith.constant 0 : i32
    %c0_i32_0 = arith.constant 0 : i32
    %c0_i32_1 = arith.constant 0 : i32
    %c0_i32_2 = arith.constant 0 : i32
    return %c0_i32, %c0_i32_0, %c0_i32_1 : i32, i32, i32
  }
  func.func @transform_3(%arg0: i32, %arg1: i32) -> (i32, i32, i32) {
    %c8_i32 = arith.constant 8 : i32
    %0 = arith.muli %arg0, %c8_i32 : i32
    %1 = arith.addi %0, %arg1 : i32
    %c0_i32 = arith.constant 0 : i32
    %c0_i32_0 = arith.constant 0 : i32
    %c0_i32_1 = arith.constant 0 : i32
    return %1, %c0_i32, %c0_i32_0 : i32, i32, i32
  }
  func.func @transform_4(%arg0: i32, %arg1: i32) -> (i32, i32, i32) {
    %c8_i32 = arith.constant 8 : i32
    %0 = arith.muli %arg0, %c8_i32 : i32
    %1 = arith.addi %0, %arg1 : i32
    %c0_i32 = arith.constant 0 : i32
    %c0_i32_0 = arith.constant 0 : i32
    %c0_i32_1 = arith.constant 0 : i32
    return %1, %c0_i32, %c0_i32_0 : i32, i32, i32
  }
}

module attributes {stable_mosaic.version = 11 : i64} {
  func.func @_bn_lrelu_kernel(%arg0: i32, %arg1: memref<16x8x128xbf16, #tpu.memory_space<vmem>>, %arg2: memref<1x1x128xf32, #tpu.memory_space<vmem>>, %arg3: memref<1x1x128xf32, #tpu.memory_space<vmem>>, %arg4: memref<16x8x8xbf16, #tpu.memory_space<vmem>>) attributes {dimension_semantics = [#tpu.dimension_semantics<parallel>], iteration_bounds = array<i64: 1>, scalar_prefetch = 0 : i64, scratch_operands = 0 : i64, tpu.core_type = #tpu.core_type<tc>, window_params = [{transform_indices = @transform_0, window_bounds = array<i64: 16, 8, 128>}, {pipeline_mode = #tpu.pipeline_mode<synchronous>, transform_indices = @transform_1, window_bounds = array<i64: 1, 1, 128>}, {pipeline_mode = #tpu.pipeline_mode<synchronous>, transform_indices = @transform_2, window_bounds = array<i64: 1, 1, 128>}, {transform_indices = @transform_3, window_bounds = array<i64: 16, 8, 8>}]} {
    %c0 = arith.constant 0 : index
    %c0_0 = arith.constant 0 : index
    %c0_1 = arith.constant 0 : index
    %0 = vector.load %arg1[%c0, %c0_0, %c0_1] : memref<16x8x128xbf16, #tpu.memory_space<vmem>>, vector<16x8x128xbf16>
    %1 = arith.extf %0 : vector<16x8x128xbf16> to vector<16x8x128xf32>
    %c0_2 = arith.constant 0 : index
    %c0_3 = arith.constant 0 : index
    %c0_4 = arith.constant 0 : index
    %2 = vector.load %arg2[%c0_2, %c0_3, %c0_4] : memref<1x1x128xf32, #tpu.memory_space<vmem>>, vector<1x1x128xf32>
    %3 = vector.broadcast %2 : vector<1x1x128xf32> to vector<16x8x128xf32>
    %4 = arith.mulf %1, %3 : vector<16x8x128xf32>
    %c0_5 = arith.constant 0 : index
    %c0_6 = arith.constant 0 : index
    %c0_7 = arith.constant 0 : index
    %5 = vector.load %arg3[%c0_5, %c0_6, %c0_7] : memref<1x1x128xf32, #tpu.memory_space<vmem>>, vector<1x1x128xf32>
    %6 = vector.broadcast %5 : vector<1x1x128xf32> to vector<16x8x128xf32>
    %7 = arith.addf %4, %6 : vector<16x8x128xf32>
    %cst = arith.constant 0.000000e+00 : f32
    %8 = vector.broadcast %cst : f32 to vector<16x8x128xf32>
    %9 = arith.cmpf ogt, %7, %8 : vector<16x8x128xf32>
    %cst_8 = arith.constant 2.000000e-01 : f32
    %10 = vector.broadcast %cst_8 : f32 to vector<16x8x128xf32>
    %11 = arith.mulf %10, %7 : vector<16x8x128xf32>
    %12 = arith.select %9, %7, %11 : vector<16x8x128xi1>, vector<16x8x128xf32>
    %13 = vector.extract_strided_slice %12 {offsets = [0, 0, 0], sizes = [16, 8, 8], strides = [1, 1, 1]} : vector<16x8x128xf32> to vector<16x8x8xf32>
    %14 = arith.truncf %13 : vector<16x8x8xf32> to vector<16x8x8xbf16>
    %c0_9 = arith.constant 0 : index
    %c0_10 = arith.constant 0 : index
    %c0_11 = arith.constant 0 : index
    %15 = vector.load %arg4[%c0_9, %c0_10, %c0_11] : memref<16x8x8xbf16, #tpu.memory_space<vmem>>, vector<16x8x8xbf16>
    tpu.vector_store %arg4[%c0_9, %c0_10, %c0_11], %14 {strides = array<i32>} : memref<16x8x8xbf16, #tpu.memory_space<vmem>>, vector<16x8x8xbf16>,
    return
  }
  func.func @transform_0(%arg0: i32) -> (i32, i32, i32) {
    %c0_i32 = arith.constant 0 : i32
    %c0_i32_0 = arith.constant 0 : i32
    %c0_i32_1 = arith.constant 0 : i32
    return %arg0, %c0_i32, %c0_i32_0 : i32, i32, i32
  }
  func.func @transform_1(%arg0: i32) -> (i32, i32, i32) {
    %c0_i32 = arith.constant 0 : i32
    %c0_i32_0 = arith.constant 0 : i32
    %c0_i32_1 = arith.constant 0 : i32
    %c0_i32_2 = arith.constant 0 : i32
    return %c0_i32, %c0_i32_0, %c0_i32_1 : i32, i32, i32
  }
  func.func @transform_2(%arg0: i32) -> (i32, i32, i32) {
    %c0_i32 = arith.constant 0 : i32
    %c0_i32_0 = arith.constant 0 : i32
    %c0_i32_1 = arith.constant 0 : i32
    %c0_i32_2 = arith.constant 0 : i32
    return %c0_i32, %c0_i32_0, %c0_i32_1 : i32, i32, i32
  }
  func.func @transform_3(%arg0: i32) -> (i32, i32, i32) {
    %c0_i32 = arith.constant 0 : i32
    %c0_i32_0 = arith.constant 0 : i32
    %c0_i32_1 = arith.constant 0 : i32
    return %arg0, %c0_i32, %c0_i32_0 : i32, i32, i32
  }
}

</mosaic_0001>

<llo_original>
// kernel: a_call__.2
$region0: #{a_call__.2}
  #allocation0 [shape = 'u32[]', space=smem, size = 0x4, offset = 0x4, fixed_abs, tag = 'smem constant byte address 0x4 - core index']
  #allocation1 [shape = 'u32[72,128]{1,0:T(1,128)}', space=vmem, size = 0x9000, scoped, tag = 'internal scratch']
  %s0 = inlined_call_operand.vmem [shape: bf16[2,9,9,16], index: 0, kind: input, shape index: {}, may-alias: {0,1}]
  %s1 = inlined_call_operand.vmem [shape: bf16[2,9,9,16], index: 1, kind: input, shape index: {}, may-alias: {0,1}]
  %s2 = inlined_call_operand.vmem [shape: bf16[4,16,128], index: 2, kind: input, shape index: {}]
  %s3 = inlined_call_operand.vmem [shape: bf16[16,8,128], index: 3, kind: output, shape index: {0}]
  %s4 = inlined_call_operand.vmem [shape: f32[16,8,256], index: 4, kind: output, shape index: {1}]
  %5 = xla_tuple %s3, %s4
  %s6 = sld [smem:[#allocation0]]
  $region53: #{a_call__.2} parent=0
    _
  %s8 = ssub.s32 1, %s6
  %s9 = scalar_select 0, %s8, %s6
  loop: start=0, step=1, limit=18
  $region2: #{a_call__.2} parent=0 // loop_pre_header
    _
  $region3: #{a_call__.2} parent=0 // loop_header
    %s11 = sphi 0, %s15
    %p12 = scmp.ge.s32.totalorder %s11, 18
    %s18 = sphi 0, %s30
    %s19 = sphi 0, %s26
    %s20 = sphi 0, %s18
    %s21 = sphi 0, %s19
    %s22 = sphi 0, %s20
    %s23 = sphi 0, %s21
    %s35 = sphi 0, %s37
    %s38 = sphi 0, %s35
    %s39 = sphi 0, %s38
    %s55 = sphi 0, %s39
    %s65 = sphi 0, %s67
    %s68 = sphi 0, %s65
    %s69 = sphi 0, %s68
    %s85 = sphi 0, %s69
    %s89 = sphi 0, %s89
    %s91 = sphi 0, %s89
    %s92 = sphi 0, %s91
    %s106 = sphi 0, %s92
    %s116 = sphi 0, %s118
    %s119 = sphi 0, %s116
    %s120 = sphi 0, %s119
    %s136 = sphi 0, %s120
    %s146 = sphi 0, %s148
    %s149 = sphi 0, %s146
    %s150 = sphi 0, %s149
    %s166 = sphi 0, %s150
  $region4: #{a_call__.2} parent=0 // loop_header_branch
    %14 = sbr.rel (%p12) target = $region8
  $region5: #{a_call__.2} parent=0 // loop_body
    %s16 = ssub.s32 %s11, 1
    %s17 = ssub.s32 %s11, 2
    %s24 = sadd.s32 1, %s19
    %p25 = scmp.ge.s32.totalorder %s24, 8
    %s26 = scalar_select %p25, 0, %s24
    %s27 = sadd.s32 1, %s18
    %s28 = scalar_select %p25, %s27, %s18
    %p29 = scmp.ge.s32.totalorder %s28, 2
    %s30 = scalar_select %p29, 0, %s28
    %s31 = ssub.s32 %s18, %s30
    %s32 = ssub.s32 %s19, %s26
    %s33 = sor.u32 %s31, %s32
    %p34 = scmp.eq.s32.totalorder %s33, 0
    %s36 = sadd.s32 %s35, 1
    %s37 = scalar_select %p34, %s35, %s36
    %p40 = pneg %p34
    %p41 = scmp.eq.s32.totalorder %s11, 15
    %p42 = por %p40, %p41
    %p43 = scmp.ne.s32.totalorder %s35, %s38
    %p44 = scmp.eq.s32.totalorder %s11, 0
    %p45 = por %p43, %p44
    %p46 = scmp.ne.s32.totalorder %s35, %s38
    %p47 = scmp.eq.s32.totalorder %s16, 15
    %p48 = por %p46, %p47
    %p49 = scmp.ne.s32.totalorder %s38, %s39
    %p50 = scmp.eq.s32.totalorder %s16, 0
    %p51 = por %p49, %p50
    %p52 = scmp.ne.s32.totalorder %s38, %s39
    %p53 = scmp.eq.s32.totalorder %s17, 15
    %p54 = por %p52, %p53
    %p56 = scmp.ne.s32.totalorder %s39, %s55
    %p57 = scmp.eq.s32.totalorder %s17, 0
    %p58 = por %p56, %p57
    %s59 = sadd.s32 %s19, 1
    %s60 = sadd.s32 %s26, 1
    %s61 = ssub.s32 %s18, %s30
    %s62 = ssub.s32 %s59, %s60
    %s63 = sor.u32 %s61, %s62
    %p64 = scmp.eq.s32.totalorder %s63, 0
    %s66 = sadd.s32 %s65, 1
    %s67 = scalar_select %p64, %s65, %s66
    %p70 = pneg %p64
    %p71 = scmp.eq.s32.totalorder %s11, 15
    %p72 = por %p70, %p71
    %p73 = scmp.ne.s32.totalorder %s65, %s68
    %p74 = scmp.eq.s32.totalorder %s11, 0
    %p75 = por %p73, %p74
    %p76 = scmp.ne.s32.totalorder %s65, %s68
    %p77 = scmp.eq.s32.totalorder %s16, 15
    %p78 = por %p76, %p77
    %p79 = scmp.ne.s32.totalorder %s68, %s69
    %p80 = scmp.eq.s32.totalorder %s16, 0
    %p81 = por %p79, %p80
    %p82 = scmp.ne.s32.totalorder %s68, %s69
    %p83 = scmp.eq.s32.totalorder %s17, 15
    %p84 = por %p82, %p83
    %p86 = scmp.ne.s32.totalorder %s69, %s85
    %p87 = scmp.eq.s32.totalorder %s17, 0
    %p88 = por %p86, %p87
    %s90 = sadd.s32 %s89, 1
    %p93 = scmp.eq.s32.totalorder %s11, 15
    %p94 = scmp.ne.s32.totalorder %s89, %s91
    %p95 = scmp.eq.s32.totalorder %s11, 0
    %p96 = por %p94, %p95
    %p97 = scmp.ne.s32.totalorder %s89, %s91
    %p98 = scmp.eq.s32.totalorder %s16, 15
    %p99 = por %p97, %p98
    %p100 = scmp.ne.s32.totalorder %s91, %s92
    %p101 = scmp.eq.s32.totalorder %s16, 0
    %p102 = por %p100, %p101
    %p103 = scmp.ne.s32.totalorder %s91, %s92
    %p104 = scmp.eq.s32.totalorder %s17, 15
    %p105 = por %p103, %p104
    %p107 = scmp.ne.s32.totalorder %s92, %s106
    %p108 = scmp.eq.s32.totalorder %s17, 0
    %p109 = por %p107, %p108
    %s110 = smul.u32 %s18, 8
    %s111 = sadd.s32 %s110, %s19
    %s112 = smul.u32 %s30, 8
    %s113 = sadd.s32 %s112, %s26
    %s114 = ssub.s32 %s111, %s113
    %p115 = scmp.eq.s32.totalorder %s114, 0
    %s117 = sadd.s32 %s116, 1
    %s118 = scalar_select %p115, %s116, %s117
    %p121 = pneg %p115
    %p122 = scmp.eq.s32.totalorder %s11, 15
    %p123 = por %p121, %p122
    %p124 = scmp.ne.s32.totalorder %s116, %s119
    %p125 = scmp.eq.s32.totalorder %s11, 0
    %p126 = por %p124, %p125
    %p127 = scmp.ne.s32.totalorder %s116, %s119
    %p128 = scmp.eq.s32.totalorder %s16, 15
    %p129 = por %p127, %p128
    %p130 = scmp.ne.s32.totalorder %s119, %s120
    %p131 = scmp.eq.s32.totalorder %s16, 0
    %p132 = por %p130, %p131
    %p133 = scmp.ne.s32.totalorder %s119, %s120
    %p134 = scmp.eq.s32.totalorder %s17, 15
    %p135 = por %p133, %p134
    %p137 = scmp.ne.s32.totalorder %s120, %s136
    %p138 = scmp.eq.s32.totalorder %s17, 0
    %p139 = por %p137, %p138
    %s140 = smul.u32 %s18, 8
    %s141 = sadd.s32 %s140, %s19
    %s142 = smul.u32 %s30, 8
    %s143 = sadd.s32 %s142, %s26
    %s144 = ssub.s32 %s141, %s143
    %p145 = scmp.eq.s32.totalorder %s144, 0
    %s147 = sadd.s32 %s146, 1
    %s148 = scalar_select %p145, %s146, %s147
    %p151 = pneg %p145
    %p152 = scmp.eq.s32.totalorder %s11, 15
    %p153 = por %p151, %p152
    %p154 = scmp.ne.s32.totalorder %s146, %s149
    %p155 = scmp.eq.s32.totalorder %s11, 0
    %p156 = por %p154, %p155
    %p157 = scmp.ne.s32.totalorder %s146, %s149
    %p158 = scmp.eq.s32.totalorder %s16, 15
    %p159 = por %p157, %p158
    %p160 = scmp.ne.s32.totalorder %s149, %s150
    %p161 = scmp.eq.s32.totalorder %s16, 0
    %p162 = por %p160, %p161
    %p163 = scmp.ne.s32.totalorder %s149, %s150
    %p164 = scmp.eq.s32.totalorder %s17, 15
    %p165 = por %p163, %p164
    %p167 = scmp.ne.s32.totalorder %s150, %s166
    %p168 = scmp.eq.s32.totalorder %s17, 0
    %p169 = por %p167, %p168
    %p170 = scmp.le.s32.totalorder 1, %s11
    %p171 = scmp.lt.s32.totalorder %s11, 17
    %p172 = pnand %p170, %p171
    %p173 = pneg %p172
    // Predicated region
    $region9: #{a_call__.2} parent=5 // pred_check
      _
    $region10: #{a_call__.2} parent=5 // pred_check_branch
      %175 = sbr.rel (%p172) target = $region12
    $region11: #{a_call__.2} parent=5 // pred_region
      %s176 = ssub.s32 %s11, 1
      // Predicated region
      $region13: #{a_call__.2} parent=11 // pred_check
        %p177 = pneg %p102
      $region14: #{a_call__.2} parent=11 // pred_check_branch
        %179 = sbr.rel (%p177) target = $region16
      $region15: #{a_call__.2} parent=11 // pred_region
        _
      $region16: #{a_call__.2} parent=11 // pred_fallthru
        _
    $region12: #{a_call__.2} parent=5 // pred_fallthru
      _
    %p180 = scmp.lt.s32.totalorder %s11, 16
    // Predicated region
    $region17: #{a_call__.2} parent=5 // pred_check
      %p181 = pneg %p180
    $region18: #{a_call__.2} parent=5 // pred_check_branch
      %183 = sbr.rel (%p181) target = $region20
    $region19: #{a_call__.2} parent=5 // pred_region
      // Predicated region
      $region21: #{a_call__.2} parent=19 // pred_check
        %p184 = pneg %p45
      $region22: #{a_call__.2} parent=19 // pred_check_branch
        %186 = sbr.rel (%p184) target = $region24
      $region23: #{a_call__.2} parent=19 // pred_region
        %p187 = scmp.lt.s32.totalorder %s18, 1
        %s188 = scalar_select %p187, %s18, 1
        %p189 = scmp.lt.s32.totalorder %s19, 8
        %s190 = scalar_select %p189, %s19, 8
        %s191 = smul.addr %s190, 2
        %s192 = smul.addr %s188, 18
        %s193 = sadd.s32 %s191, %s192
        %s194 = smul.addr %s193, 4
        %s195 = scalar_lea.vmem %s0, %s194
      $region24: #{a_call__.2} parent=19 // pred_fallthru
        _
      // Predicated region
      $region25: #{a_call__.2} parent=19 // pred_check
        %p196 = pneg %p75
      $region26: #{a_call__.2} parent=19 // pred_check_branch
        %198 = sbr.rel (%p196) target = $region28
      $region27: #{a_call__.2} parent=19 // pred_region
        %s199 = sadd.s32 %s19, 1
        %p200 = scmp.lt.s32.totalorder %s18, 1
        %s201 = scalar_select %p200, %s18, 1
        %p202 = scmp.lt.s32.totalorder %s199, 8
        %s203 = scalar_select %p202, %s199, 8
        %s204 = smul.addr %s203, 2
        %s205 = smul.addr %s201, 18
        %s206 = sadd.s32 %s204, %s205
        %s207 = smul.addr %s206, 4
        %s208 = scalar_lea.vmem %s1, %s207
        %s209 = sadd.s32 %s19, 1
      $region28: #{a_call__.2} parent=19 // pred_fallthru
        _
    $region20: #{a_call__.2} parent=5 // pred_fallthru
      _
    %p210 = scmp.le.s32.totalorder 1, %s11
    %p211 = scmp.lt.s32.totalorder %s11, 17
    %p212 = pnand %p210, %p211
    %p213 = pneg %p212
    // Predicated region
    $region29: #{a_call__.2} parent=5 // pred_check
      _
    $region30: #{a_call__.2} parent=5 // pred_check_branch
      %215 = sbr.rel (%p212) target = $region32
    $region31: #{a_call__.2} parent=5 // pred_region
      %s216 = ssub.s32 %s11, 1
      %p217 = scmp.lt.s32.totalorder %s20, 1
      %s218 = scalar_select %p217, %s20, 1
      %p219 = scmp.lt.s32.totalorder %s21, 8
      %s220 = scalar_select %p219, %s21, 8
      %s221 = smul.addr %s220, 2
      %s222 = smul.addr %s218, 18
      %s223 = sadd.s32 %s221, %s222
      %s224 = smul.addr %s223, 4
      %s225 = scalar_lea.vmem %s0, %s224
      %p226 = pneg %p51
      %p227 = pneg %p48
      %s228 = sadd.s32 %s21, 1
      %p229 = scmp.lt.s32.totalorder %s20, 1
      %s230 = scalar_select %p229, %s20, 1
      %p231 = scmp.lt.s32.totalorder %s228, 8
      %s232 = scalar_select %p231, %s228, 8
      %s233 = smul.addr %s232, 2
      %s234 = smul.addr %s230, 18
      %s235 = sadd.s32 %s233, %s234
      %s236 = smul.addr %s235, 4
      %s237 = scalar_lea.vmem %s1, %s236
      %p238 = pneg %p81
      %p239 = pneg %p78
      %p240 = pneg %p102
      %p241 = pneg %p99
      %p242 = pneg %p132
      %p243 = pneg %p129
      %s244 = smul.u32 %s20, 8
      %s245 = sadd.s32 %s244, %s21
      %p246 = scmp.lt.s32.totalorder %s245, 15
      %s247 = scalar_select %p246, %s245, 15
      %s248 = smul.addr %s247, 4
      %s249 = scalar_lea.vmem %s3, %s248
      %p250 = pneg %p162
      %p251 = pneg %p159
      %s252 = smul.u32 %s20, 8
      %s253 = sadd.s32 %s252, %s21
      %p254 = scmp.lt.s32.totalorder %s253, 15
      %s255 = scalar_select %p254, %s253, 15
      %s256 = smul.addr %s255, 2
      %s257 = smul.addr %s256, 8
      %s258 = scalar_lea.vmem %s4, %s257
      %p259 = scmp.lt.s32.totalorder %s20, 1
      %s260 = scalar_select %p259, %s20, 1
      %p261 = scmp.lt.s32.totalorder %s21, 8
      %s262 = scalar_select %p261, %s21, 8
      %s263 = smul.addr %s262, 2
      %s264 = smul.addr %s260, 18
      %s265 = sadd.s32 %s263, %s264
      %s266 = smul.addr %s265, 4
      %s267 = scalar_lea.vmem %s0, %s266
      %s268 = sadd.s32 %s21, 1
      %p269 = scmp.lt.s32.totalorder %s20, 1
      %s270 = scalar_select %p269, %s20, 1
      %p271 = scmp.lt.s32.totalorder %s268, 8
      %s272 = scalar_select %p271, %s268, 8
      %s273 = smul.addr %s272, 2
      %s274 = smul.addr %s270, 18
      %s275 = sadd.s32 %s273, %s274
      %s276 = smul.addr %s275, 4
      %s277 = scalar_lea.vmem %s1, %s276
      %s278 = sadd.s32 %s21, 1
      %s279 = smul.u32 %s20, 8
      %s280 = sadd.s32 %s279, %s21
      %p281 = scmp.lt.s32.totalorder %s280, 15
      %s282 = scalar_select %p281, %s280, 15
      %s283 = smul.addr %s282, 4
      %s284 = scalar_lea.vmem %s3, %s283
      %s285 = smul.u32 %s20, 8
      %s286 = sadd.s32 %s285, %s21
      %s287 = smul.u32 %s20, 8
      %s288 = sadd.s32 %s287, %s21
      %p289 = scmp.lt.s32.totalorder %s288, 15
      %s290 = scalar_select %p289, %s288, 15
      %s291 = smul.addr %s290, 2
      %s292 = smul.addr %s291, 8
      %s293 = scalar_lea.vmem %s4, %s292
      %s294 = smul.u32 %s20, 8
      %s295 = sadd.s32 %s294, %s21
      %v297 = vld [vmem:[%s267] sm:$0xf]
      %v298 = vld [vmem:[%s2] sm:$0xf]
      %v299 = vld [vmem:[%s2 + $0x4] sm:$0xf]
      %v300 = vld [vmem:[%s267 + $0x4] sm:$0x1]
      %s301 = scalar_lea.vmem %s2, 8
      %v302 = vld [vmem:[%s301] sm:$0xf]
      %v303 = vld [vmem:[%s301 + $0x4] sm:$0xf]
      %v306 = vunpack.c.l.b16 %v297
      %v307 = vunpack.c.l.b16 %v300
      %v308 = vpack.c.b16 %v307, %v306
      %v310 = vshrl.u32 %v308, 16
      %v312 = vshll.u32 %v308, 16
      %v314 = vrot.slane %v312, 1
      %v315 = vor.u32 %v310, %v314
      %v318 = vunpack.c.l.b16 %v302
      %v319 = vunpack.c.l.b16 %v303
      %v320 = vpack.c.b16 %v319, %v318
      %vm322 = vcmask 130048
      %v324 = vsel %vm322, %v315, 0
      %326 = vmatpush.bf16.msra.mxu0 0
      %327 = vmatpush.bf16.msra.mxu0 0
      %328 = vmatpush.bf16.msra.mxu0 0
      %329 = vmatpush.bf16.msra.mxu0 0
      %330 = vmatpush.bf16.msra.mxu0 0
      %331 = vmatpush.bf16.msra.mxu0 0
      %332 = vmatpush.bf16.msra.mxu0 0
      %333 = vmatpush.bf16.msra.mxu0 %v320
      %334 = vmatmul.bf16.gmra.mxu0 %v324
      %v335 = vpop.f32.mrf.mxu0
      %v336 = vadd.f32 0.0, %v335
      %v337 = vpop.f32.mrf.mxu0
      %338 = vdwg.mxu0
      %v341 = vunpack.c.l.b16 %v298
      %v342 = vunpack.c.l.b16 %v299
      %v343 = vpack.c.b16 %v342, %v341
      %v346 = vsel %vm322, %v297, 0
      %348 = vmatpush.bf16.msra.mxu0 0
      %349 = vmatpush.bf16.msra.mxu0 0
      %350 = vmatpush.bf16.msra.mxu0 0
      %351 = vmatpush.bf16.msra.mxu0 0
      %352 = vmatpush.bf16.msra.mxu0 0
      %353 = vmatpush.bf16.msra.mxu0 0
      %354 = vmatpush.bf16.msra.mxu0 0
      %355 = vmatpush.bf16.msra.mxu0 %v343
      %356 = vmatmul.bf16.gmra.mxu0 %v346
      %v357 = vpop.f32.mrf.mxu0
      %v358 = vadd.f32 %v336, %v357
      %v359 = vpop.f32.mrf.mxu0
      %360 = vdwg.mxu0
      %v361 = vld [vmem:[%s277] sm:$0xf]
      %s362 = scalar_lea.vmem %s2, 16
      %v363 = vld [vmem:[%s362] sm:$0xf]
      %v364 = vld [vmem:[%s362 + $0x4] sm:$0xf]
      %v367 = vunpack.c.l.b16 %v363
      %v368 = vunpack.c.l.b16 %v364
      %v369 = vpack.c.b16 %v368, %v367
      %v372 = vsel %vm322, %v361, 0
      %374 = vmatpush.bf16.msra.mxu0 0
      %375 = vmatpush.bf16.msra.mxu0 0
      %376 = vmatpush.bf16.msra.mxu0 0
      %377 = vmatpush.bf16.msra.mxu0 0
      %378 = vmatpush.bf16.msra.mxu0 0
      %379 = vmatpush.bf16.msra.mxu0 0
      %380 = vmatpush.bf16.msra.mxu0 0
      %381 = vmatpush.bf16.msra.mxu0 %v369
      %382 = vmatmul.bf16.gmra.mxu0 %v372
      %v383 = vpop.f32.mrf.mxu0
      %v384 = vadd.f32 0.0, %v383
      %v385 = vpop.f32.mrf.mxu0
      %386 = vdwg.mxu0
      %v387 = vadd.f32 %v358, %v384
      %v388 = vld [vmem:[%s277] sm:$0xf]
      %v389 = vld [vmem:[%s277 + $0x4] sm:$0x1]
      %s390 = scalar_lea.vmem %s2, 24
      %v391 = vld [vmem:[%s390] sm:$0xf]
      %v392 = vld [vmem:[%s390 + $0x4] sm:$0xf]
      %v395 = vunpack.c.l.b16 %v388
      %v396 = vunpack.c.l.b16 %v389
      %v397 = vpack.c.b16 %v396, %v395
      %v399 = vshrl.u32 %v397, 16
      %v401 = vshll.u32 %v397, 16
      %v403 = vrot.slane %v401, 1
      %v404 = vor.u32 %v399, %v403
      %v407 = vunpack.c.l.b16 %v391
      %v408 = vunpack.c.l.b16 %v392
      %v409 = vpack.c.b16 %v408, %v407
      %v412 = vsel %vm322, %v404, 0
      %414 = vmatpush.bf16.msra.mxu0 0
      %415 = vmatpush.bf16.msra.mxu0 0
      %416 = vmatpush.bf16.msra.mxu0 0
      %417 = vmatpush.bf16.msra.mxu0 0
      %418 = vmatpush.bf16.msra.mxu0 0
      %419 = vmatpush.bf16.msra.mxu0 0
      %420 = vmatpush.bf16.msra.mxu0 0
      %421 = vmatpush.bf16.msra.mxu0 %v409
      %422 = vmatmul.bf16.gmra.mxu0 %v412
      %v423 = vpop.f32.mrf.mxu0
      %v424 = vadd.f32 0.0, %v423
      %v425 = vpop.f32.mrf.mxu0
      %426 = vdwg.mxu0
      %v427 = vadd.f32 %v387, %v424
      %v428 = vpack.c.bf16 %v427, %v427
      %429 = vst [vmem:[%s284] sm:$0xf] %v428
      %v430 = vrot.slane %v427, 4
      %v431 = vadd.f32 %v427, %v430
      %v432 = vrot.slane %v431, 2
      %v433 = vadd.f32 %v431, %v432
      %v434 = vrot.slane %v433, 1
      %v435 = vadd.f32 %v433, %v434
      %v436 = vmul.f32 %v435, 0.125
      %v437 = vsub.f32 %v427, %v436
      %v438 = vmul.f32 %v437, %v437
      %v439 = vrot.slane %v438, 4
      %v440 = vadd.f32 %v438, %v439
      %v441 = vrot.slane %v440, 2
      %v442 = vadd.f32 %v440, %v441
      %v443 = vrot.slane %v442, 1
      %v444 = vadd.f32 %v442, %v443
      %445 = vst [vmem:[%s293] sm:$0xff] %v435
      %446 = vst [vmem:[%s293 + $0x8] sm:$0xff] %v444
      %s447 = smul.u32 %s20, 8
      %s448 = sadd.s32 %s447, %s21
      %p449 = scmp.lt.s32.totalorder %s448, 15
      %s450 = scalar_select %p449, %s448, 15
      %s451 = smul.addr %s450, 4
      %s452 = scalar_lea.vmem %s3, %s451
      %s453 = smul.u32 %s20, 8
      %s454 = sadd.s32 %s453, %s21
      %p455 = scmp.lt.s32.totalorder %s454, 15
      %s456 = scalar_select %p455, %s454, 15
      %s457 = smul.addr %s456, 2
      %s458 = smul.addr %s457, 8
      %s459 = scalar_lea.vmem %s4, %s458
      // Predicated region
      $region33: #{a_call__.2} parent=31 // pred_check
        %p460 = pneg %p129
      $region34: #{a_call__.2} parent=31 // pred_check_branch
        %462 = sbr.rel (%p460) target = $region36
      $region35: #{a_call__.2} parent=31 // pred_region
        %s463 = smul.u32 %s20, 8
        %s464 = sadd.s32 %s463, %s21
      $region36: #{a_call__.2} parent=31 // pred_fallthru
        _
      // Predicated region
      $region37: #{a_call__.2} parent=31 // pred_check
        %p465 = pneg %p159
      $region38: #{a_call__.2} parent=31 // pred_check_branch
        %467 = sbr.rel (%p465) target = $region40
      $region39: #{a_call__.2} parent=31 // pred_region
        %s468 = smul.u32 %s20, 8
        %s469 = sadd.s32 %s468, %s21
      $region40: #{a_call__.2} parent=31 // pred_fallthru
        _
    $region32: #{a_call__.2} parent=5 // pred_fallthru
      _
    %p470 = scmp.le.s32.totalorder 2, %s11
    // Predicated region
    $region41: #{a_call__.2} parent=5 // pred_check
      %p471 = pneg %p470
    $region42: #{a_call__.2} parent=5 // pred_check_branch
      %473 = sbr.rel (%p471) target = $region44
    $region43: #{a_call__.2} parent=5 // pred_region
      %s474 = ssub.s32 %s11, 2
      // Predicated region
      $region45: #{a_call__.2} parent=43 // pred_check
        %p475 = pneg %p135
      $region46: #{a_call__.2} parent=43 // pred_check_branch
        %477 = sbr.rel (%p475) target = $region48
      $region47: #{a_call__.2} parent=43 // pred_region
        %s478 = smul.u32 %s22, 8
        %s479 = sadd.s32 %s478, %s23
        %p480 = scmp.lt.s32.totalorder %s479, 15
        %s481 = scalar_select %p480, %s479, 15
        %s482 = smul.addr %s481, 4
        %s483 = scalar_lea.vmem %s3, %s482
      $region48: #{a_call__.2} parent=43 // pred_fallthru
        _
      // Predicated region
      $region49: #{a_call__.2} parent=43 // pred_check
        %p484 = pneg %p165
      $region50: #{a_call__.2} parent=43 // pred_check_branch
        %486 = sbr.rel (%p484) target = $region52
      $region51: #{a_call__.2} parent=43 // pred_region
        %s487 = smul.u32 %s22, 8
        %s488 = sadd.s32 %s487, %s23
        %p489 = scmp.lt.s32.totalorder %s488, 15
        %s490 = scalar_select %p489, %s488, 15
        %s491 = smul.addr %s490, 2
        %s492 = smul.addr %s491, 8
        %s493 = scalar_lea.vmem %s4, %s492
      $region52: #{a_call__.2} parent=43 // pred_fallthru
        _
    $region44: #{a_call__.2} parent=5 // pred_fallthru
      _
  $region6: #{a_call__.2} parent=0 // loop_footer
    %s15 = sadd.s32 1, %s11
  $region7: #{a_call__.2} parent=0 // loop_footer_branch
    %10 = sbr.rel target = $region3
  $region8: #{a_call__.2} parent=0 // loop_exit
    _

// kernel: a_call__.3
$region0: #{a_call__.3}
  #allocation0 [shape = 'u32[]', space=smem, size = 0x4, offset = 0x4, fixed_abs, tag = 'smem constant byte address 0x4 - core index']
  #allocation1 [shape = 'u32[72,128]{1,0:T(1,128)}', space=vmem, size = 0x9000, scoped, tag = 'internal scratch']
  %s0 = inlined_call_operand.vmem [shape: bf16[16,8,128], index: 0, kind: input, shape index: {}]
  %s1 = inlined_call_operand.vmem [shape: f32[1,1,128], index: 1, kind: input, shape index: {}]
  %s2 = inlined_call_operand.vmem [shape: f32[1,1,128], index: 2, kind: input, shape index: {}]
  %s3 = inlined_call_operand.hbm [shape: bf16[16,8,8], index: 3, kind: output, shape index: {}]
  %s4 = sld [smem:[#allocation0]]
  $region22: #{a_call__.3} parent=0
    _
  %s6 = ssub.s32 1, %s4
  %s7 = scalar_select 0, %s6, %s4
  $region1: #{a_call__.3} parent=0
    #allocation2 [shape = 'u8[32768]{0}', space=vmem, size = 0x8000, scoped, tag = 'output window, operand 0, single buffered']
    #allocation3 [shape = 's32[1]{0}', space=sflag, size = 0x4, scoped, tag = 'scoped memory for a_call__.3']
    %8 = vsyncpa [#allocation3], 0
    // Predicated region
    $region2: #{a_call__.3} parent=1 // pred_check
      _
    $region3: #{a_call__.3} parent=1 // pred_check_branch
      %10 = sbr.rel (0) target = $region5
    $region4: #{a_call__.3} parent=1 // pred_region
      _
    $region5: #{a_call__.3} parent=1 // pred_fallthru
      _
    // Predicated region
    $region6: #{a_call__.3} parent=1 // pred_check
      _
    $region7: #{a_call__.3} parent=1 // pred_check_branch
      %12 = sbr.rel (0) target = $region9
    $region8: #{a_call__.3} parent=1 // pred_region
      _
    $region9: #{a_call__.3} parent=1 // pred_fallthru
      _
    // Predicated region
    $region10: #{a_call__.3} parent=1 // pred_check
      _
    $region11: #{a_call__.3} parent=1 // pred_check_branch
      %14 = sbr.rel (0) target = $region13
    $region12: #{a_call__.3} parent=1 // pred_region
      _
    $region13: #{a_call__.3} parent=1 // pred_fallthru
      _
    %v15 = vld [vmem:[%s0] sm:$0xf]
    %v16 = vld [vmem:[%s0 + $0x4] sm:$0xf]
    %v17 = vld [vmem:[%s0 + $0x8] sm:$0xf]
    %v18 = vld [vmem:[%s0 + $0xc] sm:$0xf]
    %v19 = vld [vmem:[%s0 + $0x10] sm:$0xf]
    %v20 = vld [vmem:[%s0 + $0x14] sm:$0xf]
    %v21 = vld [vmem:[%s0 + $0x18] sm:$0xf]
    %v22 = vld [vmem:[%s0 + $0x1c] sm:$0xf]
    %v23 = vld [vmem:[%s0 + $0x20] sm:$0xf]
    %v24 = vld [vmem:[%s0 + $0x24] sm:$0xf]
    %v25 = vld [vmem:[%s0 + $0x28] sm:$0xf]
    %v26 = vld [vmem:[%s0 + $0x2c] sm:$0xf]
    %v27 = vld [vmem:[%s0 + $0x30] sm:$0xf]
    %v28 = vld [vmem:[%s0 + $0x34] sm:$0xf]
    %v29 = vld [vmem:[%s0 + $0x38] sm:$0xf]
    %v30 = vld [vmem:[%s0 + $0x3c] sm:$0xf]
    %v31 = vunpack.c.l.bf16 %v15
    %v32 = vunpack.c.l.bf16 %v16
    %v33 = vunpack.c.l.bf16 %v17
    %v34 = vunpack.c.l.bf16 %v18
    %v35 = vunpack.c.l.bf16 %v19
    %v36 = vunpack.c.l.bf16 %v20
    %v37 = vunpack.c.l.bf16 %v21
    %v38 = vunpack.c.l.bf16 %v22
    %v39 = vunpack.c.l.bf16 %v23
    %v40 = vunpack.c.l.bf16 %v24
    %v41 = vunpack.c.l.bf16 %v25
    %v42 = vunpack.c.l.bf16 %v26
    %v43 = vunpack.c.l.bf16 %v27
    %v44 = vunpack.c.l.bf16 %v28
    %v45 = vunpack.c.l.bf16 %v29
    %v46 = vunpack.c.l.bf16 %v30
    %v47 = vld [vmem:[%s1] sm:$0x1]
    %v49 = vperm.slane %v47, 0
    %v51 = vmul.f32 %v31, %v49
    %v52 = vmul.f32 %v32, %v49
    %v53 = vmul.f32 %v33, %v49
    %v54 = vmul.f32 %v34, %v49
    %v55 = vmul.f32 %v35, %v49
    %v56 = vmul.f32 %v36, %v49
    %v57 = vmul.f32 %v37, %v49
    %v58 = vmul.f32 %v38, %v49
    %v59 = vmul.f32 %v39, %v49
    %v60 = vmul.f32 %v40, %v49
    %v61 = vmul.f32 %v41, %v49
    %v62 = vmul.f32 %v42, %v49
    %v63 = vmul.f32 %v43, %v49
    %v64 = vmul.f32 %v44, %v49
    %v65 = vmul.f32 %v45, %v49
    %v66 = vmul.f32 %v46, %v49
    %v67 = vld [vmem:[%s2] sm:$0x1]
    %v69 = vperm.slane %v67, 0
    %v71 = vadd.f32 %v51, %v69
    %v72 = vadd.f32 %v52, %v69
    %v73 = vadd.f32 %v53, %v69
    %v74 = vadd.f32 %v54, %v69
    %v75 = vadd.f32 %v55, %v69
    %v76 = vadd.f32 %v56, %v69
    %v77 = vadd.f32 %v57, %v69
    %v78 = vadd.f32 %v58, %v69
    %v79 = vadd.f32 %v59, %v69
    %v80 = vadd.f32 %v60, %v69
    %v81 = vadd.f32 %v61, %v69
    %v82 = vadd.f32 %v62, %v69
    %v83 = vadd.f32 %v63, %v69
    %v84 = vadd.f32 %v64, %v69
    %v85 = vadd.f32 %v65, %v69
    %v86 = vadd.f32 %v66, %v69
    %vm87 = vcmp.gt.f32.partialorder %v71, 0.0
    %vm88 = vcmp.gt.f32.partialorder %v72, 0.0
    %vm89 = vcmp.gt.f32.partialorder %v73, 0.0
    %vm90 = vcmp.gt.f32.partialorder %v74, 0.0
    %vm91 = vcmp.gt.f32.partialorder %v75, 0.0
    %vm92 = vcmp.gt.f32.partialorder %v76, 0.0
    %vm93 = vcmp.gt.f32.partialorder %v77, 0.0
    %vm94 = vcmp.gt.f32.partialorder %v78, 0.0
    %vm95 = vcmp.gt.f32.partialorder %v79, 0.0
    %vm96 = vcmp.gt.f32.partialorder %v80, 0.0
    %vm97 = vcmp.gt.f32.partialorder %v81, 0.0
    %vm98 = vcmp.gt.f32.partialorder %v82, 0.0
    %vm99 = vcmp.gt.f32.partialorder %v83, 0.0
    %vm100 = vcmp.gt.f32.partialorder %v84, 0.0
    %vm101 = vcmp.gt.f32.partialorder %v85, 0.0
    %vm102 = vcmp.gt.f32.partialorder %v86, 0.0
    %v103 = vmul.f32 %v71, 0.2
    %v104 = vmul.f32 %v72, 0.2
    %v105 = vmul.f32 %v73, 0.2
    %v106 = vmul.f32 %v74, 0.2
    %v107 = vmul.f32 %v75, 0.2
    %v108 = vmul.f32 %v76, 0.2
    %v109 = vmul.f32 %v77, 0.2
    %v110 = vmul.f32 %v78, 0.2
    %v111 = vmul.f32 %v79, 0.2
    %v112 = vmul.f32 %v80, 0.2
    %v113 = vmul.f32 %v81, 0.2
    %v114 = vmul.f32 %v82, 0.2
    %v115 = vmul.f32 %v83, 0.2
    %v116 = vmul.f32 %v84, 0.2
    %v117 = vmul.f32 %v85, 0.2
    %v118 = vmul.f32 %v86, 0.2
    %v119 = vsel %vm87, %v71, %v103
    %v120 = vsel %vm88, %v72, %v104
    %v121 = vsel %vm89, %v73, %v105
    %v122 = vsel %vm90, %v74, %v106
    %v123 = vsel %vm91, %v75, %v107
    %v124 = vsel %vm92, %v76, %v108
    %v125 = vsel %vm93, %v77, %v109
    %v126 = vsel %vm94, %v78, %v110
    %v127 = vsel %vm95, %v79, %v111
    %v128 = vsel %vm96, %v80, %v112
    %v129 = vsel %vm97, %v81, %v113
    %v130 = vsel %vm98, %v82, %v114
    %v131 = vsel %vm99, %v83, %v115
    %v132 = vsel %vm100, %v84, %v116
    %v133 = vsel %vm101, %v85, %v117
    %v134 = vsel %vm102, %v86, %v118
    %v135 = vpack.c.bf16 %v119, %v119
    %v136 = vpack.c.bf16 %v120, %v120
    %v137 = vpack.c.bf16 %v121, %v121
    %v138 = vpack.c.bf16 %v122, %v122
    %v139 = vpack.c.bf16 %v123, %v123
    %v140 = vpack.c.bf16 %v124, %v124
    %v141 = vpack.c.bf16 %v125, %v125
    %v142 = vpack.c.bf16 %v126, %v126
    %v143 = vpack.c.bf16 %v127, %v127
    %v144 = vpack.c.bf16 %v128, %v128
    %v145 = vpack.c.bf16 %v129, %v129
    %v146 = vpack.c.bf16 %v130, %v130
    %v147 = vpack.c.bf16 %v131, %v131
    %v148 = vpack.c.bf16 %v132, %v132
    %v149 = vpack.c.bf16 %v133, %v133
    %v150 = vpack.c.bf16 %v134, %v134
    %vm151 = vcmask 60416
    %152 = vst.msk [vmem:[#allocation2] sm:$0xf] %vm151, %v135
    %153 = vst.msk [vmem:[#allocation2 + $0x4] sm:$0xf] %vm151, %v136
    %154 = vst.msk [vmem:[#allocation2 + $0x8] sm:$0xf] %vm151, %v137
    %155 = vst.msk [vmem:[#allocation2 + $0xc] sm:$0xf] %vm151, %v138
    %156 = vst.msk [vmem:[#allocation2 + $0x10] sm:$0xf] %vm151, %v139
    %157 = vst.msk [vmem:[#allocation2 + $0x14] sm:$0xf] %vm151, %v140
    %158 = vst.msk [vmem:[#allocation2 + $0x18] sm:$0xf] %vm151, %v141
    %159 = vst.msk [vmem:[#allocation2 + $0x1c] sm:$0xf] %vm151, %v142
    %160 = vst.msk [vmem:[#allocation2 + $0x20] sm:$0xf] %vm151, %v143
    %161 = vst.msk [vmem:[#allocation2 + $0x24] sm:$0xf] %vm151, %v144
    %162 = vst.msk [vmem:[#allocation2 + $0x28] sm:$0xf] %vm151, %v145
    %163 = vst.msk [vmem:[#allocation2 + $0x2c] sm:$0xf] %vm151, %v146
    %164 = vst.msk [vmem:[#allocation2 + $0x30] sm:$0xf] %vm151, %v147
    %165 = vst.msk [vmem:[#allocation2 + $0x34] sm:$0xf] %vm151, %v148
    %166 = vst.msk [vmem:[#allocation2 + $0x38] sm:$0xf] %vm151, %v149
    %167 = vst.msk [vmem:[#allocation2 + $0x3c] sm:$0xf] %vm151, %v150
    // Predicated region
    $region14: #{a_call__.3} parent=1 // pred_check
      _
    $region15: #{a_call__.3} parent=1 // pred_check_branch
      %169 = sbr.rel (0) target = $region17
    $region16: #{a_call__.3} parent=1 // pred_region
      %171 = vsyncadd [#allocation3], 0
      %s172 = sshll.u32 [#allocation2], 4
      %s173 = int_to_ptr.vmem [resolvable:$true] %s172
      %s174 = sshll.u32 %s3, 4
      %s175 = int_to_ptr.hbm [resolvable:$true] %s174
      %180 = dma.vmem_to_hbm [thread:$0]  %s173, 1024, %s175, [#allocation3], 64, 64, 4
    $region17: #{a_call__.3} parent=1 // pred_fallthru
      _
    // Predicated region
    $region18: #{a_call__.3} parent=1 // pred_check
      _
    $region19: #{a_call__.3} parent=1 // pred_check_branch
      %182 = sbr.rel (0) target = $region21
    $region20: #{a_call__.3} parent=1 // pred_region
      %184 = dma.done [#allocation3], 1024
    $region21: #{a_call__.3} parent=1 // pred_fallthru
      _
    %185 = vsyncpa [#allocation3], 1

</llo_original>
